<compile_context>
chip_gen: v7x
topology: tpu7x:2x2x1
jax: 0.10.0
libtpu: 0.0.40
codegen_flags: <defaults>
</compile_context>

<pallas_src>
import jax
import jax.numpy as jnp
from jax.experimental import pallas as pl
from jax.experimental.pallas import tpu as pltpu


def _round_up(a, b):
    return (a + b - 1) // b * b


def _cdiv(a, b):
    return (a + b - 1) // b


def _device_vmem_bytes():
    """Per-core VMEM capacity; conservative 64 MiB (v7x) if the query fails."""
    try:
        cap = int(pltpu.get_tpu_info().vmem_capacity_bytes)
        if cap > 0:
            return cap
    except Exception:
        pass
    return 64 << 20


# ----------------------------- kernels --------------------------------------


def _mlp_resident_kernel(x_ref, w1_ref, b1_ref, w2_ref, b2_ref, o_ref):
    # Weights are VMEM-resident (constant block index for the whole grid);
    # one M tile per grid step, full-width ffn intermediate, no reduction axis.
    x = x_ref[...].astype(w1_ref.dtype)                     # f32 -> bf16 in-kernel
    h = jnp.dot(x, w1_ref[...], preferred_element_type=jnp.float32)
    h = jnp.maximum(h + b1_ref[...], 0.0)
    y = jnp.dot(h.astype(w2_ref.dtype), w2_ref[...],
                preferred_element_type=jnp.float32)
    o_ref[...] = (y + b2_ref[...]).astype(o_ref.dtype)


def _mlp_streamed_kernel_f32out(x_ref, w1_ref, b1_ref, w2_ref, b2_ref, o_ref):
    # Fallback (weights > VMEM): reduce over ffn chunks, accumulating directly
    # in the f32, VMEM-resident output tile -- no accumulator scratch.
    f = pl.program_id(1)

    @pl.when(f == 0)
    def _():
        o_ref[...] = jnp.broadcast_to(b2_ref[...], o_ref.shape)

    x = x_ref[...].astype(w1_ref.dtype)
    h = jnp.dot(x, w1_ref[...], preferred_element_type=jnp.float32)
    h = jnp.maximum(h + b1_ref[...], 0.0)
    o_ref[...] += jnp.dot(h.astype(w2_ref.dtype), w2_ref[...],
                          preferred_element_type=jnp.float32)


def _mlp_streamed_kernel_scratch(x_ref, w1_ref, b1_ref, w2_ref, b2_ref, o_ref,
                                 acc_ref):
    # Fallback variant for non-f32 outputs (needs an f32 accumulator scratch).
    f = pl.program_id(1)

    @pl.when(f == 0)
    def _():
        acc_ref[...] = jnp.zeros_like(acc_ref)

    x = x_ref[...].astype(w1_ref.dtype)
    h = jnp.dot(x, w1_ref[...], preferred_element_type=jnp.float32)
    h = jnp.maximum(h + b1_ref[...], 0.0)
    acc_ref[...] += jnp.dot(h.astype(w2_ref.dtype), w2_ref[...],
                            preferred_element_type=jnp.float32)

    @pl.when(f == pl.num_programs(1) - 1)
    def _():
        o_ref[...] = (acc_ref[...] + b2_ref[...]).astype(o_ref.dtype)


# ----------------------------- wrapper ---------------------------------------


def _fused_mlp(x2d, w1p, b1p, w2p, b2p, dout, *, out_dtype=None, tile_m=256):
    """relu(x @ W1 + b1) @ W2 + b2 fused in one Pallas kernel.

    x2d: (M, Din) f32/bf16 (cast to bf16 inside the kernel)
    w1p: (Din, Fp) bf16, b1p: (1, Fp) f32, w2p: (Fp, Np) bf16, b2p: (1, Np) f32,
    with Fp/Np pre-padded to multiples of 128.  Returns (M, dout).
    """
    M, Din = x2d.shape
    Fp = w1p.shape[1]
    Np = w2p.shape[1]
    if out_dtype is None:
        out_dtype = x2d.dtype
    x_isz = jnp.dtype(x2d.dtype).itemsize
    o_isz = jnp.dtype(out_dtype).itemsize

    vmem_cap = _device_vmem_bytes()
    usable = vmem_cap - (8 << 20)            # headroom for Mosaic internal scratch

    # --- M tiling: never exceed the array; give both v7x cores work ----------
    tile_m = min(tile_m, M)
    if tile_m == M and M > 64:
        tile_m = min(M, _round_up(_cdiv(M, 2), 16))
    if tile_m != M and tile_m % 8 != 0:
        tile_m = _round_up(tile_m, 8)
    num_m = _cdiv(M, tile_m)

    w_bytes = w1p.nbytes + b1p.nbytes + w2p.nbytes + b2p.nbytes
    flops = 2 * M * (Din * Fp + Fp * Np)

    def resident_need(tm):
        return (2 * w_bytes                       # weight buffers (allow 2x alloc)
                + 2 * tm * Din * x_isz            # double-buffered x tiles
                + 2 * tm * Np * o_isz             # double-buffered out tiles
                + tm * Fp * 4                     # h intermediate (f32)
                + tm * Np * 4                     # y (f32) before store cast
                + (2 << 20))                      # margin

    if resident_need(tile_m) <= usable:
        # ---------------- weights VMEM-resident, grid over M only ------------
        vmem_limit = int(min(max(resident_need(tile_m), 32 << 20), usable))
        cost = pl.CostEstimate(
            flops=flops, transcendentals=0,
            bytes_accessed=int(x2d.nbytes + w_bytes + M * Np * o_isz))
        out = pl.pallas_call(
            _mlp_resident_kernel,
            out_shape=jax.ShapeDtypeStruct((M, Np), out_dtype),
            grid_spec=pltpu.PrefetchScalarGridSpec(
                num_scalar_prefetch=0,
                grid=(num_m,),
                in_specs=[
                    pl.BlockSpec((tile_m, Din), lambda i: (i, 0)),   # x tile
                    pl.BlockSpec((Din, Fp), lambda i: (0, 0)),       # w1 (once)
                    pl.BlockSpec((1, Fp), lambda i: (0, 0)),         # b1 (once)
                    pl.BlockSpec((Fp, Np), lambda i: (0, 0)),        # w2 (once)
                    pl.BlockSpec((1, Np), lambda i: (0, 0)),         # b2 (once)
                ],
                out_specs=pl.BlockSpec((tile_m, Np), lambda i: (i, 0)),
            ),
            compiler_params=pltpu.CompilerParams(
                dimension_semantics=("parallel",),
                vmem_limit_bytes=vmem_limit,
            ),
            cost_estimate=cost,
        )(x2d, w1p, b1p, w2p, b2p)
        return out if Np == dout else out[:, :dout]

    # ---------------- fallback: stream weights in ffn chunks -----------------
    tile_m = min(512, M)
    if tile_m != M and tile_m % 8 != 0:
        tile_m = _round_up(tile_m, 8)

    f32_out = jnp.dtype(out_dtype) == jnp.dtype(jnp.float32)

    def streamed_need(tm, tf):
        acc_bytes = 0 if f32_out else tm * Np * 4
        return (2 * tm * Din * x_isz
                + 2 * Din * tf * 2 + 2 * tf * 4      # w1 / b1 chunks
                + 2 * tf * Np * 2 + 2 * Np * 4       # w2 chunk / b2
                + 2 * tm * Np * o_isz                # out tiles
                + tm * tf * 4                        # h chunk (f32)
                + acc_bytes
                + (2 << 20))

    tile_f = None
    while tile_f is None:
        for cand in (2048, 1024, 512, 256, 128):
            if Fp % cand == 0 and streamed_need(tile_m, cand) <= usable:
                tile_f = cand
                break
        if tile_f is None:
            if tile_m <= 64:
                tile_f = 128        # last resort; Mosaic may spill
            else:
                tile_m = max(64, _round_up(tile_m // 2, 8))

    num_m = _cdiv(M, tile_m)
    num_f = Fp // tile_f
    vmem_limit = int(min(max(streamed_need(tile_m, tile_f), 32 << 20), usable))
    cost = pl.CostEstimate(
        flops=flops, transcendentals=0,
        bytes_accessed=int(x2d.nbytes + num_m * w_bytes + M * Np * o_isz))

    kernel = (_mlp_streamed_kernel_f32out if f32_out
              else _mlp_streamed_kernel_scratch)
    scratch = [] if f32_out else [pltpu.VMEM((tile_m, Np), jnp.float32)]

    out = pl.pallas_call(
        kernel,
        out_shape=jax.ShapeDtypeStruct((M, Np), out_dtype),
        grid_spec=pltpu.PrefetchScalarGridSpec(
            num_scalar_prefetch=0,
            grid=(num_m, num_f),
            in_specs=[
                pl.BlockSpec((tile_m, Din), lambda i, f: (i, 0)),   # x (reused over f)
                pl.BlockSpec((Din, tile_f), lambda i, f: (0, f)),   # w1 chunk
                pl.BlockSpec((1, tile_f), lambda i, f: (0, f)),     # b1 chunk
                pl.BlockSpec((tile_f, Np), lambda i, f: (f, 0)),    # w2 chunk
                pl.BlockSpec((1, Np), lambda i, f: (0, 0)),         # b2
            ],
            out_specs=pl.BlockSpec((tile_m, Np), lambda i, f: (i, 0)),
            scratch_shapes=scratch,
        ),
        compiler_params=pltpu.CompilerParams(
            dimension_semantics=("parallel", "arbitrary"),
            vmem_limit_bytes=vmem_limit,
        ),
        cost_estimate=cost,
    )(x2d, w1p, b1p, w2p, b2p)
    return out if Np == dout else out[:, :dout]


# ----------------------------- module ----------------------------------------


class LinearAdaptor:
    """JAX/Pallas equivalent of the funasr `Linear` adaptor module."""

    def __init__(self, downsample_rate, encoder_dim, llm_dim, ffn_dim=2048,
                 dtype=jnp.float32, out_dtype=None, key=None):
        self.k = downsample_rate
        self.encoder_dim = encoder_dim
        self.llm_dim = llm_dim
        self.ffn_dim = ffn_dim
        self.out_dtype = out_dtype        # None -> same dtype as the input

        if key is None:
            key = jax.random.PRNGKey(0)
        k1, k2, k3, k4 = jax.random.split(key, 4)
        in1 = encoder_dim * self.k
        # PyTorch nn.Linear stores weight as (out_features, in_features);
        # init deterministically in that shape, then transpose for the kernel.
        s1 = 1.0 / jnp.sqrt(jnp.float32(in1))
        s2 = 1.0 / jnp.sqrt(jnp.float32(ffn_dim))
        w1_t = jax.random.uniform(k1, (ffn_dim, in1), dtype, -s1, s1)
        b1 = jax.random.uniform(k2, (ffn_dim,), dtype, -s1, s1)
        w2_t = jax.random.uniform(k3, (llm_dim, ffn_dim), dtype, -s2, s2)
        b2 = jax.random.uniform(k4, (llm_dim,), dtype, -s2, s2)

        # f32 masters (for reference numerics / potential re-export).
        self.w1 = jnp.transpose(w1_t)            # (enc*k, ffn)
        self.b1 = b1.reshape(1, ffn_dim)         # (1, ffn)
        self.w2 = jnp.transpose(w2_t)            # (ffn, llm)
        self.b2 = b2.reshape(1, llm_dim)         # (1, llm)

        # One-time preprocessing (perf feedback): pre-cast MXU operands to bf16
        # and pre-pad F/N to lane multiples of 128 so the per-call hot path
        # never touches the full f32 weights again.
        Fp = _round_up(ffn_dim, 128)
        Np = _round_up(llm_dim, 128)
        w1b = self.w1.astype(jnp.bfloat16)
        b1f = self.b1.astype(jnp.float32)
        w2b = self.w2.astype(jnp.bfloat16)
        b2f = self.b2.astype(jnp.float32)
        if Fp != ffn_dim:
            w1b = jnp.pad(w1b, ((0, 0), (0, Fp - ffn_dim)))
            b1f = jnp.pad(b1f, ((0, 0), (0, Fp - ffn_dim)))
            w2b = jnp.pad(w2b, ((0, Fp - ffn_dim), (0, 0)))
        if Np != llm_dim:
            w2b = jnp.pad(w2b, ((0, 0), (0, Np - llm_dim)))
            b2f = jnp.pad(b2f, ((0, 0), (0, Np - llm_dim)))
        self._w1p = jax.block_until_ready(w1b)
        self._b1p = jax.block_until_ready(b1f)
        self._w2p = jax.block_until_ready(w2b)
        self._b2p = jax.block_until_ready(b2f)

    def __call__(self, x):
        # x: (B, T, encoder_dim)
        B, T, D = x.shape
        assert D == self.encoder_dim
        discard = T % self.k
        if discard > 0:
            x = x[:, : T - discard, :]
        Ts = x.shape[1] // self.k
        # frame stacking: (B*Ts, D*k); both matmuls + bias + ReLU run in one kernel
        x2d = x.reshape(B * Ts, D * self.k)
        y2d = _fused_mlp(x2d, self._w1p, self._b1p, self._w2p, self._b2p,
                         self.llm_dim, out_dtype=self.out_dtype or x.dtype)
        return y2d.reshape(B, Ts, self.llm_dim)


# ----------------------------- references ------------------------------------


def _reference_bf16(x, mod):
    """Mirror the kernel numerics: bf16 MXU operands, f32 accumulation."""
    B, T, D = x.shape
    discard = T % mod.k
    if discard > 0:
        x = x[:, : T - discard, :]
    Ts = x.shape[1] // mod.k
    xs = x.reshape(B, Ts, D * mod.k).astype(jnp.bfloat16)
    h = jnp.dot(xs, mod.w1.astype(jnp.bfloat16),
                preferred_element_type=jnp.float32) + mod.b1
    h = jnp.maximum(h, 0.0)
    y = jnp.dot(h.astype(jnp.bfloat16), mod.w2.astype(jnp.bfloat16),
                preferred_element_type=jnp.float32) + mod.b2
    return y.astype(x.dtype)


def _reference_f32(x, mod):
    # TODO(synk): PyTorch's f32 nn.Linear chain; kernel uses bf16 MXU operands
    # (inference-friendly), so only a loose comparison is meaningful here.
    B, T, D = x.shape
    discard = T % mod.k
    if discard > 0:
        x = x[:, : T - discard, :]
    Ts = x.shape[1] // mod.k
    xs = x.reshape(B, Ts, D * mod.k)
    h = jnp.maximum(xs @ mod.w1 + mod.b1, 0.0)
    return h @ mod.w2 + mod.b2


if __name__ == "__main__":
    key = jax.random.PRNGKey(0)
    kx, kp, kx2, kp2 = jax.random.split(key, 4)

    # Case 1: tiny shapes; exercises the frame-discard path (T=9, k=2) and the
    # output lane-padding path (llm_dim=64 < 128).
    B, T, enc_dim, k, llm_dim, ffn_dim = 2, 9, 32, 2, 64, 128
    x = jax.random.normal(kx, (B, T, enc_dim), jnp.float32)
    mod = LinearAdaptor(downsample_rate=k, encoder_dim=enc_dim,
                        llm_dim=llm_dim, ffn_dim=ffn_dim, key=kp)
    out = jax.block_until_ready(mod(x))
    assert out.shape == (B, T // k, llm_dim), out.shape

    ref_mp = _reference_bf16(x, mod)
    assert jnp.allclose(out, ref_mp, atol=1e-3, rtol=1e-3), float(
        jnp.max(jnp.abs(out - ref_mp)))
    ref_f32 = _reference_f32(x, mod)
    assert jnp.allclose(out, ref_f32, atol=5e-2, rtol=5e-2), float(
        jnp.max(jnp.abs(out - ref_f32)))

    # Case 2: multi-tile M (M=75 rows -> 2 ragged M tiles) to exercise the
    # "parallel" grid path with a ragged last tile (no activation padding copy).
    B2, T2, enc2, k2, llm2, ffn2 = 3, 50, 32, 2, 128, 256
    x2 = jax.random.normal(kx2, (B2, T2, enc2), jnp.float32)
    mod2 = LinearAdaptor(downsample_rate=k2, encoder_dim=enc2,
                         llm_dim=llm2, ffn_dim=ffn2, key=kp2)
    out2 = jax.block_until_ready(mod2(x2))
    assert out2.shape == (B2, T2 // k2, llm2), out2.shape
    ref2 = _reference_bf16(x2, mod2)
    assert jnp.allclose(out2, ref2, atol=1e-3, rtol=1e-3), float(
        jnp.max(jnp.abs(out2 - ref2)))

    print("KERNEL_OK")
</pallas_src>

<mosaic_0001>
module attributes {stable_mosaic.version = 11 : i64} {
  func.func @_mlp_resident_kernel(%arg0: i32, %arg1: memref<8x64xf32, #tpu.memory_space<vmem>>, %arg2: memref<64x128xbf16, #tpu.memory_space<vmem>>, %arg3: memref<1x128xf32, #tpu.memory_space<vmem>>, %arg4: memref<128x128xbf16, #tpu.memory_space<vmem>>, %arg5: memref<1x128xf32, #tpu.memory_space<vmem>>, %arg6: memref<8x128xf32, #tpu.memory_space<vmem>>) attributes {dimension_semantics = [#tpu.dimension_semantics<parallel>], iteration_bounds = array<i64: 1>, scalar_prefetch = 0 : i64, scratch_operands = 0 : i64, tpu.core_type = #tpu.core_type<tc>, window_params = [{transform_indices = @transform_0, window_bounds = array<i64: 8, 64>}, {pipeline_mode = #tpu.pipeline_mode<synchronous>, transform_indices = @transform_1, window_bounds = array<i64: 64, 128>}, {pipeline_mode = #tpu.pipeline_mode<synchronous>, transform_indices = @transform_2, window_bounds = array<i64: 1, 128>}, {pipeline_mode = #tpu.pipeline_mode<synchronous>, transform_indices = @transform_3, window_bounds = array<i64: 128, 128>}, {pipeline_mode = #tpu.pipeline_mode<synchronous>, transform_indices = @transform_4, window_bounds = array<i64: 1, 128>}, {transform_indices = @transform_5, window_bounds = array<i64: 8, 128>}]} {
    %c0 = arith.constant 0 : index
    %c0_0 = arith.constant 0 : index
    %0 = vector.load %arg1[%c0, %c0_0] : memref<8x64xf32, #tpu.memory_space<vmem>>, vector<8x64xf32>
    %1 = arith.truncf %0 : vector<8x64xf32> to vector<8x64xbf16>
    %c0_1 = arith.constant 0 : index
    %c0_2 = arith.constant 0 : index
    %2 = vector.load %arg2[%c0_1, %c0_2] : memref<64x128xbf16, #tpu.memory_space<vmem>>, vector<64x128xbf16>
    %cst = arith.constant dense<0.000000e+00> : vector<8x128xf32>
    %3 = tpu.matmul %1, %2, %cst {dimension_numbers = #tpu.dot_dimension_numbers<[1], [0], [0], [1], [0, 0, 1, 1], [], []>} : vector<8x64xbf16>, vector<64x128xbf16>, vector<8x128xf32> -> vector<8x128xf32>
    %c0_3 = arith.constant 0 : index
    %c0_4 = arith.constant 0 : index
    %4 = vector.load %arg3[%c0_3, %c0_4] : memref<1x128xf32, #tpu.memory_space<vmem>>, vector<1x128xf32>
    %5 = vector.broadcast %4 : vector<1x128xf32> to vector<8x128xf32>
    %6 = arith.addf %3, %5 : vector<8x128xf32>
    %cst_5 = arith.constant 0.000000e+00 : f32
    %7 = vector.broadcast %cst_5 : f32 to vector<8x128xf32>
    %8 = arith.maximumf %6, %7 : vector<8x128xf32>
    %9 = arith.truncf %8 : vector<8x128xf32> to vector<8x128xbf16>
    %c0_6 = arith.constant 0 : index
    %c0_7 = arith.constant 0 : index
    %10 = vector.load %arg4[%c0_6, %c0_7] : memref<128x128xbf16, #tpu.memory_space<vmem>>, vector<128x128xbf16>
    %cst_8 = arith.constant dense<0.000000e+00> : vector<8x128xf32>
    %11 = tpu.matmul %9, %10, %cst_8 {dimension_numbers = #tpu.dot_dimension_numbers<[1], [0], [0], [1], [0, 0, 1, 1], [], []>} : vector<8x128xbf16>, vector<128x128xbf16>, vector<8x128xf32> -> vector<8x128xf32>
    %c0_9 = arith.constant 0 : index
    %c0_10 = arith.constant 0 : index
    %12 = vector.load %arg5[%c0_9, %c0_10] : memref<1x128xf32, #tpu.memory_space<vmem>>, vector<1x128xf32>
    %13 = vector.broadcast %12 : vector<1x128xf32> to vector<8x128xf32>
    %14 = arith.addf %11, %13 : vector<8x128xf32>
    %c0_11 = arith.constant 0 : index
    %c0_12 = arith.constant 0 : index
    %15 = vector.load %arg6[%c0_11, %c0_12] : memref<8x128xf32, #tpu.memory_space<vmem>>, vector<8x128xf32>
    tpu.vector_store %arg6[%c0_11, %c0_12], %14 {strides = array<i32>} : memref<8x128xf32, #tpu.memory_space<vmem>>, vector<8x128xf32>,
    return
  }
  func.func @transform_0(%arg0: i32) -> (i32, i32) {
    %c0_i32 = arith.constant 0 : i32
    %c0_i32_0 = arith.constant 0 : i32
    return %arg0, %c0_i32 : i32, i32
  }
  func.func @transform_1(%arg0: i32) -> (i32, i32) {
    %c0_i32 = arith.constant 0 : i32
    %c0_i32_0 = arith.constant 0 : i32
    %c0_i32_1 = arith.constant 0 : i32
    return %c0_i32, %c0_i32_0 : i32, i32
  }
  func.func @transform_2(%arg0: i32) -> (i32, i32) {
    %c0_i32 = arith.constant 0 : i32
    %c0_i32_0 = arith.constant 0 : i32
    %c0_i32_1 = arith.constant 0 : i32
    return %c0_i32, %c0_i32_0 : i32, i32
  }
  func.func @transform_3(%arg0: i32) -> (i32, i32) {
    %c0_i32 = arith.constant 0 : i32
    %c0_i32_0 = arith.constant 0 : i32
    %c0_i32_1 = arith.constant 0 : i32
    return %c0_i32, %c0_i32_0 : i32, i32
  }
  func.func @transform_4(%arg0: i32) -> (i32, i32) {
    %c0_i32 = arith.constant 0 : i32
    %c0_i32_0 = arith.constant 0 : i32
    %c0_i32_1 = arith.constant 0 : i32
    return %c0_i32, %c0_i32_0 : i32, i32
  }
  func.func @transform_5(%arg0: i32) -> (i32, i32) {
    %c0_i32 = arith.constant 0 : i32
    %c0_i32_0 = arith.constant 0 : i32
    return %arg0, %c0_i32 : i32, i32
  }
}

</mosaic_0001>

<llo_original>
// kernel: tpu_custom_call.1
$region0: #{tpu_custom_call.1}
  #allocation0 [shape = 'u32[]', space=smem, size = 0x4, offset = 0x4, fixed_abs, tag = 'smem constant byte address 0x4 - core index']
  #allocation1 [shape = 'u32[144,128]{1,0:T(1,128)}', space=vmem, size = 0x12000, scoped, tag = 'internal scratch']
  %s0 = inlined_call_operand.hbm [shape: f32[8,64], index: 0, kind: input, shape index: {}]
  %s1 = inlined_call_operand.hbm [shape: bf16[64,128], index: 1, kind: input, shape index: {}]
  %s2 = inlined_call_operand.vmem [shape: f32[1,128], index: 2, kind: input, shape index: {}]
  %s3 = inlined_call_operand.hbm [shape: bf16[128,128], index: 3, kind: input, shape index: {}]
  %s4 = inlined_call_operand.vmem [shape: f32[1,128], index: 4, kind: input, shape index: {}]
  %s5 = inlined_call_operand.hbm [shape: f32[8,128], index: 5, kind: output, shape index: {}]
  %s6 = sld [smem:[#allocation0]]
  $region42: #{tpu_custom_call.1} parent=0
    _
  %s8 = ssub.s32 1, %s6
  %s9 = scalar_select 0, %s8, %s6
  $region1: #{tpu_custom_call.1} parent=0
    #allocation2 [shape = 'u8[4096]{0}', space=vmem, size = 0x1000, scoped, tag = 'input window, operand 0, single buffered']
    #allocation3 [shape = 's32[1]{0}', space=sflag, size = 0x4, scoped, tag = 'scoped memory for tpu_custom_call.1']
    #allocation4 [shape = 's32[1]{0}', space=sflag, size = 0x4, scoped, tag = 'scoped memory for tpu_custom_call.1']
    #allocation5 [shape = 'u8[16384]{0}', space=vmem, size = 0x4000, scoped, tag = 'input window, operand 1, single buffered']
    #allocation6 [shape = 's32[1]{0}', space=sflag, size = 0x4, scoped, tag = 'scoped memory for tpu_custom_call.1']
    #allocation7 [shape = 'u8[32768]{0}', space=vmem, size = 0x8000, scoped, tag = 'input window, operand 3, single buffered']
    #allocation8 [shape = 'u8[4096]{0}', space=vmem, size = 0x1000, scoped, tag = 'output window, operand 0, single buffered']
    %10 = vsyncpa [#allocation3], 0
    %11 = vsyncpa [#allocation6], 0
    %12 = vsyncpa [#allocation4], 0
    // Predicated region
    $region2: #{tpu_custom_call.1} parent=1 // pred_check
      _
    $region3: #{tpu_custom_call.1} parent=1 // pred_check_branch
      %14 = sbr.rel (0) target = $region5
    $region4: #{tpu_custom_call.1} parent=1 // pred_region
      %s16 = ssub.s32 128, 128
      %17 = vsyncadd [#allocation3], %s16
      %s19 = sshll.u32 [#allocation2], 4
      %s20 = int_to_ptr.vmem [resolvable:$true] %s19
      %22 = dma.hbm_to_vmem [thread:$0]  %s0, 128, %s20, [#allocation3]
    $region5: #{tpu_custom_call.1} parent=1 // pred_fallthru
      _
    // Predicated region
    $region6: #{tpu_custom_call.1} parent=1 // pred_check
      _
    $region7: #{tpu_custom_call.1} parent=1 // pred_check_branch
      %24 = sbr.rel (0) target = $region9
    $region8: #{tpu_custom_call.1} parent=1 // pred_region
      %s26 = ssub.s32 512, 512
      %27 = vsyncadd [#allocation6], %s26
      %s28 = sshll.u32 [#allocation5], 4
      %s29 = int_to_ptr.vmem [resolvable:$true] %s28
      %34 = dma.hbm_to_vmem [thread:$0]  %s1, 512, %s29, [#allocation6], 64, 64, 4
    $region9: #{tpu_custom_call.1} parent=1 // pred_fallthru
      _
    // Predicated region
    $region10: #{tpu_custom_call.1} parent=1 // pred_check
      _
    $region11: #{tpu_custom_call.1} parent=1 // pred_check_branch
      %36 = sbr.rel (0) target = $region13
    $region12: #{tpu_custom_call.1} parent=1 // pred_region
      _
    $region13: #{tpu_custom_call.1} parent=1 // pred_fallthru
      _
    // Predicated region
    $region14: #{tpu_custom_call.1} parent=1 // pred_check
      _
    $region15: #{tpu_custom_call.1} parent=1 // pred_check_branch
      %38 = sbr.rel (0) target = $region17
    $region16: #{tpu_custom_call.1} parent=1 // pred_region
      %s40 = ssub.s32 1024, 1024
      %41 = vsyncadd [#allocation6], %s40
      %s42 = sshll.u32 [#allocation7], 4
      %s43 = int_to_ptr.vmem [resolvable:$true] %s42
      %48 = dma.hbm_to_vmem [thread:$0]  %s3, 1024, %s43, [#allocation6], 64, 64, 4
    $region17: #{tpu_custom_call.1} parent=1 // pred_fallthru
      _
    // Predicated region
    $region18: #{tpu_custom_call.1} parent=1 // pred_check
      _
    $region19: #{tpu_custom_call.1} parent=1 // pred_check_branch
      %50 = sbr.rel (0) target = $region21
    $region20: #{tpu_custom_call.1} parent=1 // pred_region
      _
    $region21: #{tpu_custom_call.1} parent=1 // pred_fallthru
      _
    // Predicated region
    $region22: #{tpu_custom_call.1} parent=1 // pred_check
      _
    $region23: #{tpu_custom_call.1} parent=1 // pred_check_branch
      %52 = sbr.rel (0) target = $region25
    $region24: #{tpu_custom_call.1} parent=1 // pred_region
      %53 = dma.done [#allocation3], 128
    $region25: #{tpu_custom_call.1} parent=1 // pred_fallthru
      _
    // Predicated region
    $region26: #{tpu_custom_call.1} parent=1 // pred_check
      _
    $region27: #{tpu_custom_call.1} parent=1 // pred_check_branch
      %55 = sbr.rel (0) target = $region29
    $region28: #{tpu_custom_call.1} parent=1 // pred_region
      %56 = dma.done [#allocation6], 512
    $region29: #{tpu_custom_call.1} parent=1 // pred_fallthru
      _
    // Predicated region
    $region30: #{tpu_custom_call.1} parent=1 // pred_check
      _
    $region31: #{tpu_custom_call.1} parent=1 // pred_check_branch
      %58 = sbr.rel (0) target = $region33
    $region32: #{tpu_custom_call.1} parent=1 // pred_region
      %59 = dma.done [#allocation6], 1024
    $region33: #{tpu_custom_call.1} parent=1 // pred_fallthru
      _
    %v61 = vld [vmem:[#allocation2] sm:$0xff]
    %v62 = vpack.c.bf16 %v61, %v61
    %v63 = vld [vmem:[#allocation5] sm:$0xf]
    %v64 = vld [vmem:[#allocation5 + $0x4] sm:$0xf]
    %v65 = vld [vmem:[#allocation5 + $0x8] sm:$0xf]
    %v66 = vld [vmem:[#allocation5 + $0xc] sm:$0xf]
    %v67 = vld [vmem:[#allocation5 + $0x10] sm:$0xf]
    %v68 = vld [vmem:[#allocation5 + $0x14] sm:$0xf]
    %v69 = vld [vmem:[#allocation5 + $0x18] sm:$0xf]
    %v70 = vld [vmem:[#allocation5 + $0x1c] sm:$0xf]
    %v71 = vld [vmem:[%s2] sm:$0x1]
    %v73 = vlaneseq
    %v74 = vshrl.u32 %v73, 7
    %v75 = vsub.s32 0, %v74
    %v76 = vrot.slane %v71, %v75
    %v86 = vunpack.c.l.b16 %v63
    %v87 = vunpack.c.l.b16 %v64
    %v88 = vunpack.c.l.b16 %v65
    %v89 = vunpack.c.l.b16 %v66
    %v90 = vunpack.c.l.b16 %v67
    %v91 = vunpack.c.l.b16 %v68
    %v92 = vunpack.c.l.b16 %v69
    %v93 = vunpack.c.l.b16 %v70
    %v94 = vpack.c.b16 %v87, %v86
    %v95 = vpack.c.b16 %v89, %v88
    %v96 = vpack.c.b16 %v91, %v90
    %v97 = vpack.c.b16 %v93, %v92
    %vm102 = vcmask 523264
    %v104 = vsel %vm102, %v62, 0
    %106 = vmatprep.subr.bf16.mxu0 0
    %107 = vmatpush1.bf16.msra.mxu0 %v94
    %108 = vmatprep.subr.bf16.mxu0 0
    %109 = vmatpush1.bf16.msra.mxu0 %v95
    %110 = vmatprep.subr.bf16.mxu0 0
    %111 = vmatpush1.bf16.msra.mxu0 %v96
    %112 = vmatprep.subr.bf16.mxu0 0
    %113 = vmatpush1.bf16.msra.mxu0 %v97
    %114 = vmatprep.subr.bf16.mxu0 0
    %115 = vmatpush1.bf16.msra.mxu0 0
    %116 = vmatprep.subr.bf16.mxu0 0
    %117 = vmatpush1.bf16.msra.mxu0 0
    %118 = vmatprep.subr.bf16.mxu0 0
    %119 = vmatpush1.bf16.msra.mxu0 0
    %120 = vmatprep.subr.bf16.mxu0 0
    %121 = vmatpush1.bf16.msra.mxu0 0
    %122 = vmatprep.subr.bf16.mxu0 0
    %123 = vmatpush1.bf16.msra.mxu0 0
    %124 = vmatprep.subr.bf16.mxu0 0
    %125 = vmatpush1.bf16.msra.mxu0 0
    %126 = vmatprep.subr.bf16.mxu0 0
    %127 = vmatpush1.bf16.msra.mxu0 0
    %128 = vmatprep.subr.bf16.mxu0 0
    %129 = vmatpush1.bf16.msra.mxu0 0
    %130 = vmatprep.subr.bf16.mxu0 0
    %131 = vmatpush1.bf16.msra.mxu0 0
    %132 = vmatprep.subr.bf16.mxu0 0
    %133 = vmatpush1.bf16.msra.mxu0 0
    %134 = vmatprep.subr.bf16.mxu0 0
    %135 = vmatpush1.bf16.msra.mxu0 0
    %136 = vmatprep.subr.bf16.mxu0 0
    %137 = vmatpush1.bf16.msra.mxu0 0
    %138 = vmatprep.mubr.bf16.mxu0 0
    %139 = vmatmul.mubr.bf16.gmra.mrb[0].mxu0 %v104
    %v140 = vpop.f32.mrb[0].mxu0
    %v141 = vadd.f32 %v76, %v140
    %v142 = vpop.f32.mrb[0].mxu0
    %v143 = vpop.f32.mrb[0].mxu0
    %v144 = vpop.f32.mrb[0].mxu0
    %145 = vdwg.mxu0
    %v146 = vmax.f32 %v141, 0.0
    %v147 = vpack.c.bf16 %v146, %v146
    %v148 = vld [vmem:[#allocation7] sm:$0xf]
    %v149 = vld [vmem:[#allocation7 + $0x4] sm:$0xf]
    %v150 = vld [vmem:[#allocation7 + $0x8] sm:$0xf]
    %v151 = vld [vmem:[#allocation7 + $0xc] sm:$0xf]
    %v152 = vld [vmem:[#allocation7 + $0x10] sm:$0xf]
    %v153 = vld [vmem:[#allocation7 + $0x14] sm:$0xf]
    %v154 = vld [vmem:[#allocation7 + $0x18] sm:$0xf]
    %v155 = vld [vmem:[#allocation7 + $0x1c] sm:$0xf]
    %v156 = vld [vmem:[#allocation7 + $0x20] sm:$0xf]
    %v157 = vld [vmem:[#allocation7 + $0x24] sm:$0xf]
    %v158 = vld [vmem:[#allocation7 + $0x28] sm:$0xf]
    %v159 = vld [vmem:[#allocation7 + $0x2c] sm:$0xf]
    %v160 = vld [vmem:[#allocation7 + $0x30] sm:$0xf]
    %v161 = vld [vmem:[#allocation7 + $0x34] sm:$0xf]
    %v162 = vld [vmem:[#allocation7 + $0x38] sm:$0xf]
    %v163 = vld [vmem:[#allocation7 + $0x3c] sm:$0xf]
    %v164 = vld [vmem:[%s4] sm:$0x1]
    %v166 = vlaneseq
    %v167 = vshrl.u32 %v166, 7
    %v168 = vsub.s32 0, %v167
    %v169 = vrot.slane %v164, %v168
    %v187 = vunpack.c.l.b16 %v148
    %v188 = vunpack.c.l.b16 %v149
    %v189 = vunpack.c.l.b16 %v150
    %v190 = vunpack.c.l.b16 %v151
    %v191 = vunpack.c.l.b16 %v152
    %v192 = vunpack.c.l.b16 %v153
    %v193 = vunpack.c.l.b16 %v154
    %v194 = vunpack.c.l.b16 %v155
    %v195 = vunpack.c.l.b16 %v156
    %v196 = vunpack.c.l.b16 %v157
    %v197 = vunpack.c.l.b16 %v158
    %v198 = vunpack.c.l.b16 %v159
    %v199 = vunpack.c.l.b16 %v160
    %v200 = vunpack.c.l.b16 %v161
    %v201 = vunpack.c.l.b16 %v162
    %v202 = vunpack.c.l.b16 %v163
    %v203 = vpack.c.b16 %v188, %v187
    %v204 = vpack.c.b16 %v190, %v189
    %v205 = vpack.c.b16 %v192, %v191
    %v206 = vpack.c.b16 %v194, %v193
    %v207 = vpack.c.b16 %v196, %v195
    %v208 = vpack.c.b16 %v198, %v197
    %v209 = vpack.c.b16 %v200, %v199
    %v210 = vpack.c.b16 %v202, %v201
    %219 = vmatprep.subr.bf16.mxu0 0
    %220 = vmatpush1.bf16.msra.mxu0 %v203
    %221 = vmatprep.subr.bf16.mxu0 0
    %222 = vmatpush1.bf16.msra.mxu0 %v204
    %223 = vmatprep.subr.bf16.mxu0 0
    %224 = vmatpush1.bf16.msra.mxu0 %v205
    %225 = vmatprep.subr.bf16.mxu0 0
    %226 = vmatpush1.bf16.msra.mxu0 %v206
    %227 = vmatprep.subr.bf16.mxu0 0
    %228 = vmatpush1.bf16.msra.mxu0 %v207
    %229 = vmatprep.subr.bf16.mxu0 0
    %230 = vmatpush1.bf16.msra.mxu0 %v208
    %231 = vmatprep.subr.bf16.mxu0 0
    %232 = vmatpush1.bf16.msra.mxu0 %v209
    %233 = vmatprep.subr.bf16.mxu0 0
    %234 = vmatpush1.bf16.msra.mxu0 %v210
    %235 = vmatprep.subr.bf16.mxu0 0
    %236 = vmatpush1.bf16.msra.mxu0 0
    %237 = vmatprep.subr.bf16.mxu0 0
    %238 = vmatpush1.bf16.msra.mxu0 0
    %239 = vmatprep.subr.bf16.mxu0 0
    %240 = vmatpush1.bf16.msra.mxu0 0
    %241 = vmatprep.subr.bf16.mxu0 0
    %242 = vmatpush1.bf16.msra.mxu0 0
    %243 = vmatprep.subr.bf16.mxu0 0
    %244 = vmatpush1.bf16.msra.mxu0 0
    %245 = vmatprep.subr.bf16.mxu0 0
    %246 = vmatpush1.bf16.msra.mxu0 0
    %247 = vmatprep.subr.bf16.mxu0 0
    %248 = vmatpush1.bf16.msra.mxu0 0
    %249 = vmatprep.subr.bf16.mxu0 0
    %250 = vmatpush1.bf16.msra.mxu0 0
    %251 = vmatprep.mubr.bf16.mxu0 0
    %252 = vmatmul.mubr.bf16.gmra.mrb[0].mxu0 %v147
    %v253 = vpop.f32.mrb[0].mxu0
    %v254 = vadd.f32 %v169, %v253
    %v255 = vpop.f32.mrb[0].mxu0
    %v256 = vpop.f32.mrb[0].mxu0
    %v257 = vpop.f32.mrb[0].mxu0
    %258 = vdwg.mxu0
    %259 = vst [vmem:[#allocation8] sm:$0xff] %v254
    // Predicated region
    $region34: #{tpu_custom_call.1} parent=1 // pred_check
      _
    $region35: #{tpu_custom_call.1} parent=1 // pred_check_branch
      %261 = sbr.rel (0) target = $region37
    $region36: #{tpu_custom_call.1} parent=1 // pred_region
      %s263 = ssub.s32 128, 128
      %264 = vsyncadd [#allocation4], %s263
      %s266 = sshll.u32 [#allocation8], 4
      %s267 = int_to_ptr.vmem [resolvable:$true] %s266
      %269 = dma.vmem_to_hbm [thread:$0]  %s267, 128, %s5, [#allocation4]
    $region37: #{tpu_custom_call.1} parent=1 // pred_fallthru
      _
    // Predicated region
    $region38: #{tpu_custom_call.1} parent=1 // pred_check
      _
    $region39: #{tpu_custom_call.1} parent=1 // pred_check_branch
      %271 = sbr.rel (0) target = $region41
    $region40: #{tpu_custom_call.1} parent=1 // pred_region
      %272 = dma.done [#allocation4], 128
    $region41: #{tpu_custom_call.1} parent=1 // pred_fallthru
      _
    %273 = vsyncpa [#allocation3], 1
    %274 = vsyncpa [#allocation6], 1
    %275 = vsyncpa [#allocation4], 1

</llo_original>
